<compile_context>
chip_gen: v5e
topology: v5e:2x2
jax: 0.10.0
libtpu: 0.0.40
codegen_flags: <defaults>
</compile_context>

<pallas_src>
import jax
import jax.numpy as jnp
from jax.experimental import pallas as pl
from jax.experimental.pallas import tpu as pltpu


def _round_up(x, m):
    return ((x + m - 1) // m) * m


def _discriminator_kernel(x_ref, w1_ref, b1_ref, w2_ref, b2_ref, o_ref):
    # x_ref : [TB, D]   w1_ref : [D, 20]   b1_ref : [1, 20]
    # w2_ref: [1, 20]   b2_ref : [1, 1]    o_ref  : [TB, 1]
    x = x_ref[...]

    # Linear(input_size, 20) -> single padded MXU pass, f32 accumulation.
    h = jnp.dot(x, w1_ref[...], preferred_element_type=jnp.float32) + b1_ref[...]

    # LeakyReLU(negative_slope=0.2) on the VPU.
    h = jnp.where(h > 0, h, 0.2 * h)

    # Linear(20, 1): N=1, so use lane-wise multiply + cross-lane reduce
    # (VPU/XLU) instead of a 1/128-utilized MXU matmul.
    y = jnp.sum(h * w2_ref[...], axis=-1, keepdims=True) + b2_ref[...]

    # Sigmoid (exp goes to the EUP slot).
    o_ref[...] = jax.nn.sigmoid(y).astype(o_ref.dtype)


def discriminator_forward(x, w1, b1, w2, b2, *, block_b=1024):
    """x: [B, D] float32; w1: [D, 20]; b1: [20]; w2: [20, 1]; b2: [1].

    Returns sigmoid(leaky_relu(x @ w1 + b1, 0.2) @ w2 + b2) of shape [B, 1].
    """
    B, D = x.shape
    H = w1.shape[1]   # 20

    # Batch tile: multiple of 8 sublanes, capped at block_b, no bigger than
    # the 8-padded batch itself. With D small (f32), even TB=1024 is only
    # ~TB*D*4*2 bytes double-buffered — far under the scoped VMEM limit on
    # every generation (incl. v7x's 64 MiB).
    tb = _round_up(min(block_b, _round_up(B, 8)), 8)
    padded_B = _round_up(B, tb)
    if padded_B != B:
        x = jnp.pad(x, ((0, padded_B - B), (0, 0)))

    # Small params reshaped to 2-D rows for TPU-friendly broadcasting.
    b1_2d = b1.reshape(1, H)
    w2_row = w2.reshape(1, H)   # transpose of [20, 1] -> [1, 20] row
    b2_2d = b2.reshape(1, 1)

    grid = (padded_B // tb,)

    out = pl.pallas_call(
        _discriminator_kernel,
        out_shape=jax.ShapeDtypeStruct((padded_B, 1), jnp.float32),
        grid=grid,
        in_specs=[
            pl.BlockSpec((tb, D), lambda i: (i, 0)),   # x: streamed per step
            pl.BlockSpec((D, H), lambda i: (0, 0)),    # w1: VMEM-resident
            pl.BlockSpec((1, H), lambda i: (0, 0)),    # b1: VMEM-resident
            pl.BlockSpec((1, H), lambda i: (0, 0)),    # w2 row: VMEM-resident
            pl.BlockSpec((1, 1), lambda i: (0, 0)),    # b2: VMEM-resident
        ],
        out_specs=pl.BlockSpec((tb, 1), lambda i: (i, 0)),
        compiler_params=pltpu.CompilerParams(
            dimension_semantics=("parallel",)),        # v7x: shard across 2 TCs
    )(x, w1, b1_2d, w2_row, b2_2d)

    return out[:B]


def init_params(key, input_size, hidden=20, out=1):
    """Deterministic init mimicking PyTorch nn.Linear defaults
    (uniform in +/- 1/sqrt(fan_in)). Weights stored as [in, out]."""
    k1, k2, k3, k4 = jax.random.split(key, 4)
    bound1 = 1.0 / jnp.sqrt(input_size)
    bound2 = 1.0 / jnp.sqrt(hidden)
    w1 = jax.random.uniform(k1, (input_size, hidden), jnp.float32, -bound1, bound1)
    b1 = jax.random.uniform(k2, (hidden,), jnp.float32, -bound1, bound1)
    w2 = jax.random.uniform(k3, (hidden, out), jnp.float32, -bound2, bound2)
    b2 = jax.random.uniform(k4, (out,), jnp.float32, -bound2, bound2)
    return w1, b1, w2, b2


def _reference(x, w1, b1, w2, b2):
    h = x @ w1 + b1
    h = jnp.where(h > 0, h, 0.2 * h)
    return jax.nn.sigmoid(h @ w2 + b2)


if __name__ == "__main__":
    input_size = 32
    key = jax.random.PRNGKey(0)
    k_x, k_p, k_x2 = jax.random.split(key, 3)
    w1, b1, w2, b2 = init_params(k_p, input_size)

    # Case 1: small batch not a multiple of 8 (exercises the padding path).
    batch = 10
    x = jax.random.normal(k_x, (batch, input_size), jnp.float32)
    out = jax.block_until_ready(discriminator_forward(x, w1, b1, w2, b2))
    ref = _reference(x, w1, b1, w2, b2)
    assert out.shape == (batch, 1)
    assert jnp.allclose(out, ref, atol=1e-5, rtol=1e-5)

    # Case 2: batch larger than the tile (exercises the multi-step grid with
    # a ragged tail that gets padded).
    batch2 = 300
    x2 = jax.random.normal(k_x2, (batch2, input_size), jnp.float32)
    out2 = jax.block_until_ready(
        discriminator_forward(x2, w1, b1, w2, b2, block_b=128))
    ref2 = _reference(x2, w1, b1, w2, b2)
    assert out2.shape == (batch2, 1)
    assert jnp.allclose(out2, ref2, atol=1e-5, rtol=1e-5)

    print("KERNEL_OK")
</pallas_src>

<mosaic_0001>
module attributes {stable_mosaic.version = 11 : i64} {
  func.func @_discriminator_kernel(%arg0: i32, %arg1: memref<16x32xf32, #tpu.memory_space<vmem>>, %arg2: memref<32x20xf32, #tpu.memory_space<vmem>>, %arg3: memref<1x20xf32, #tpu.memory_space<vmem>>, %arg4: memref<1x20xf32, #tpu.memory_space<vmem>>, %arg5: memref<1x1xf32, #tpu.memory_space<vmem>>, %arg6: memref<16x1xf32, #tpu.memory_space<vmem>>) attributes {dimension_semantics = [#tpu.dimension_semantics<parallel>], iteration_bounds = array<i64: 1>, scalar_prefetch = 0 : i64, scratch_operands = 0 : i64, tpu.core_type = #tpu.core_type<tc>, window_params = [{transform_indices = @transform_0, window_bounds = array<i64: 16, 32>}, {pipeline_mode = #tpu.pipeline_mode<synchronous>, transform_indices = @transform_1, window_bounds = array<i64: 32, 20>}, {pipeline_mode = #tpu.pipeline_mode<synchronous>, transform_indices = @transform_2, window_bounds = array<i64: 1, 20>}, {pipeline_mode = #tpu.pipeline_mode<synchronous>, transform_indices = @transform_3, window_bounds = array<i64: 1, 20>}, {pipeline_mode = #tpu.pipeline_mode<synchronous>, transform_indices = @transform_4, window_bounds = array<i64: 1, 1>}, {transform_indices = @transform_5, window_bounds = array<i64: 16, 1>}]} {
    %c0 = arith.constant 0 : index
    %c0_0 = arith.constant 0 : index
    %0 = vector.load %arg1[%c0, %c0_0] : memref<16x32xf32, #tpu.memory_space<vmem>>, vector<16x32xf32>
    %c0_1 = arith.constant 0 : index
    %c0_2 = arith.constant 0 : index
    %1 = vector.load %arg2[%c0_1, %c0_2] : memref<32x20xf32, #tpu.memory_space<vmem>>, vector<32x20xf32>
    %cst = arith.constant dense<0.000000e+00> : vector<16x20xf32>
    %2 = tpu.matmul %0, %1, %cst {dimension_numbers = #tpu.dot_dimension_numbers<[1], [0], [0], [1], [0, 0, 1, 1], [], []>} : vector<16x32xf32>, vector<32x20xf32>, vector<16x20xf32> -> vector<16x20xf32>
    %c0_3 = arith.constant 0 : index
    %c0_4 = arith.constant 0 : index
    %3 = vector.load %arg3[%c0_3, %c0_4] : memref<1x20xf32, #tpu.memory_space<vmem>>, vector<1x20xf32>
    %4 = vector.broadcast %3 : vector<1x20xf32> to vector<16x20xf32>
    %5 = arith.addf %2, %4 : vector<16x20xf32>
    %cst_5 = arith.constant 0.000000e+00 : f32
    %6 = vector.broadcast %cst_5 : f32 to vector<16x20xf32>
    %7 = arith.cmpf ogt, %5, %6 : vector<16x20xf32>
    %cst_6 = arith.constant 2.000000e-01 : f32
    %8 = vector.broadcast %cst_6 : f32 to vector<16x20xf32>
    %9 = arith.mulf %8, %5 : vector<16x20xf32>
    %10 = arith.select %7, %5, %9 : vector<16x20xi1>, vector<16x20xf32>
    %c0_7 = arith.constant 0 : index
    %c0_8 = arith.constant 0 : index
    %11 = vector.load %arg4[%c0_7, %c0_8] : memref<1x20xf32, #tpu.memory_space<vmem>>, vector<1x20xf32>
    %12 = vector.broadcast %11 : vector<1x20xf32> to vector<16x20xf32>
    %13 = arith.mulf %10, %12 : vector<16x20xf32>
    %cst_9 = arith.constant dense<0.000000e+00> : vector<16xf32>
    %14 = vector.multi_reduction <add>, %13, %cst_9 [1] : vector<16x20xf32> to vector<16xf32>
    %15 = vector.shape_cast %14 : vector<16xf32> to vector<16x1xf32>
    %c0_10 = arith.constant 0 : index
    %c0_11 = arith.constant 0 : index
    %16 = vector.load %arg5[%c0_10, %c0_11] : memref<1x1xf32, #tpu.memory_space<vmem>>, vector<1x1xf32>
    %17 = vector.broadcast %16 : vector<1x1xf32> to vector<16x1xf32>
    %18 = arith.addf %15, %17 : vector<16x1xf32>
    %19 = arith.negf %18 : vector<16x1xf32>
    %20 = math.exp %19 : vector<16x1xf32>
    %cst_12 = arith.constant 1.000000e+00 : f32
    %21 = vector.broadcast %cst_12 : f32 to vector<16x1xf32>
    %22 = arith.addf %21, %20 : vector<16x1xf32>
    %23 = arith.divf %21, %22 : vector<16x1xf32>
    %c0_13 = arith.constant 0 : index
    %c0_14 = arith.constant 0 : index
    %24 = vector.load %arg6[%c0_13, %c0_14] : memref<16x1xf32, #tpu.memory_space<vmem>>, vector<16x1xf32>
    tpu.vector_store %arg6[%c0_13, %c0_14], %23 {strides = array<i32>} : memref<16x1xf32, #tpu.memory_space<vmem>>, vector<16x1xf32>,
    return
  }
  func.func @transform_0(%arg0: i32) -> (i32, i32) {
    %c0_i32 = arith.constant 0 : i32
    %c0_i32_0 = arith.constant 0 : i32
    return %arg0, %c0_i32 : i32, i32
  }
  func.func @transform_1(%arg0: i32) -> (i32, i32) {
    %c0_i32 = arith.constant 0 : i32
    %c0_i32_0 = arith.constant 0 : i32
    %c0_i32_1 = arith.constant 0 : i32
    return %c0_i32, %c0_i32_0 : i32, i32
  }
  func.func @transform_2(%arg0: i32) -> (i32, i32) {
    %c0_i32 = arith.constant 0 : i32
    %c0_i32_0 = arith.constant 0 : i32
    %c0_i32_1 = arith.constant 0 : i32
    return %c0_i32, %c0_i32_0 : i32, i32
  }
  func.func @transform_3(%arg0: i32) -> (i32, i32) {
    %c0_i32 = arith.constant 0 : i32
    %c0_i32_0 = arith.constant 0 : i32
    %c0_i32_1 = arith.constant 0 : i32
    return %c0_i32, %c0_i32_0 : i32, i32
  }
  func.func @transform_4(%arg0: i32) -> (i32, i32) {
    %c0_i32 = arith.constant 0 : i32
    %c0_i32_0 = arith.constant 0 : i32
    %c0_i32_1 = arith.constant 0 : i32
    return %c0_i32, %c0_i32_0 : i32, i32
  }
  func.func @transform_5(%arg0: i32) -> (i32, i32) {
    %c0_i32 = arith.constant 0 : i32
    %c0_i32_0 = arith.constant 0 : i32
    return %arg0, %c0_i32 : i32, i32
  }
}

</mosaic_0001>

<llo_original>
// kernel: tpu_custom_call.1
$region0: #{tpu_custom_call.1}
  #allocation0 [shape = 'u32[]', space=smem, size = 0x4, offset = 0x4, fixed_abs, tag = 'smem constant byte address 0x4 - core index']
  #allocation1 [shape = 'u32[72,128]{1,0:T(1,128)}', space=vmem, size = 0x9000, scoped, tag = 'internal scratch']
  #allocation2 [shape = 'f32[1,1]{1,0:T(1,128)S(1)}', space=vmem, size = 0x200, scoped, tag = 'scoped memory for tpu_custom_call.1']
  %s0 = inlined_call_operand.vmem [shape: f32[16,32], index: 0, kind: input, shape index: {}]
  %s1 = inlined_call_operand.vmem [shape: f32[32,20], index: 1, kind: input, shape index: {}]
  %s2 = inlined_call_operand.vmem [shape: f32[1,20], index: 2, kind: input, shape index: {}]
  %s3 = inlined_call_operand.vmem [shape: f32[1,20], index: 3, kind: input, shape index: {}]
  %s4 = inlined_call_operand.<no memory space> [shape: f32[1,1], index: 4, kind: input, shape index: {}]
  %s5 = inlined_call_operand.vmem [shape: f32[16,1], index: 5, kind: output, shape index: {}]
  %s6 = sld [smem:[#allocation0]]
  $region30: #{tpu_custom_call.1} parent=0
    _
  %s8 = ssub.s32 1, %s6
  %s9 = scalar_select 0, %s8, %s6
  %v10 = vstv %s4
  %11 = vst [vmem:[#allocation2] sm:$0x1] %v10
  // Predicated region
  $region2: #{tpu_custom_call.1} parent=0 // pred_check
    _
  $region3: #{tpu_custom_call.1} parent=0 // pred_check_branch
    %13 = sbr.rel (0) target = $region5
  $region4: #{tpu_custom_call.1} parent=0 // pred_region
    _
  $region5: #{tpu_custom_call.1} parent=0 // pred_fallthru
    _
  // Predicated region
  $region6: #{tpu_custom_call.1} parent=0 // pred_check
    _
  $region7: #{tpu_custom_call.1} parent=0 // pred_check_branch
    %15 = sbr.rel (0) target = $region9
  $region8: #{tpu_custom_call.1} parent=0 // pred_region
    _
  $region9: #{tpu_custom_call.1} parent=0 // pred_fallthru
    _
  // Predicated region
  $region10: #{tpu_custom_call.1} parent=0 // pred_check
    _
  $region11: #{tpu_custom_call.1} parent=0 // pred_check_branch
    %17 = sbr.rel (0) target = $region13
  $region12: #{tpu_custom_call.1} parent=0 // pred_region
    _
  $region13: #{tpu_custom_call.1} parent=0 // pred_fallthru
    _
  // Predicated region
  $region14: #{tpu_custom_call.1} parent=0 // pred_check
    _
  $region15: #{tpu_custom_call.1} parent=0 // pred_check_branch
    %19 = sbr.rel (0) target = $region17
  $region16: #{tpu_custom_call.1} parent=0 // pred_region
    _
  $region17: #{tpu_custom_call.1} parent=0 // pred_fallthru
    _
  // Predicated region
  $region18: #{tpu_custom_call.1} parent=0 // pred_check
    _
  $region19: #{tpu_custom_call.1} parent=0 // pred_check_branch
    %21 = sbr.rel (0) target = $region21
  $region20: #{tpu_custom_call.1} parent=0 // pred_region
    _
  $region21: #{tpu_custom_call.1} parent=0 // pred_fallthru
    _
  %v22 = vld [vmem:[%s0] sm:$0xff]
  %v23 = vld [vmem:[%s0 + $0x8] sm:$0xff]
  %v24 = vld [vmem:[%s1] sm:$0xff]
  %v25 = vld [vmem:[%s1 + $0x8] sm:$0xff]
  %v26 = vld [vmem:[%s1 + $0x10] sm:$0xff]
  %v27 = vld [vmem:[%s1 + $0x18] sm:$0xff]
  %v28 = vld [vmem:[%s2] sm:$0x1]
  %v30 = vperm.slane %v28, 0
  %vm32 = vcmask 261120
  %v34 = vsel %vm32, %v22, 0
  %v37 = vsel %vm32, %v23, 0
  %39 = vmatpush.msra.mxu0 0.0
  %40 = vmatpush.msra.mxu0 0.0
  %41 = vmatpush.msra.mxu0 0.0
  %42 = vmatpush.msra.mxu0 0.0
  %43 = vmatpush.msra.mxu0 0.0
  %44 = vmatpush.msra.mxu0 0.0
  %45 = vmatpush.msra.mxu0 0.0
  %46 = vmatpush.msra.mxu0 0.0
  %47 = vmatpush.msra.mxu0 0.0
  %48 = vmatpush.msra.mxu0 0.0
  %49 = vmatpush.msra.mxu0 0.0
  %50 = vmatpush.msra.mxu0 0.0
  %51 = vmatpush.msra.mxu0 %v27
  %52 = vmatpush.msra.mxu0 %v26
  %53 = vmatpush.msra.mxu0 %v25
  %54 = vmatpush.msra.mxu0 %v24
  %55 = vmatmul.f32.gmra.mxu0 %v34
  %v56 = vpop.f32.mrf.mxu0
  %v57 = vadd.f32 %v30, %v56
  %58 = vmatmul.f32.gmra.mxu0 %v37
  %v59 = vpop.f32.mrf.mxu0
  %v60 = vadd.f32 %v30, %v59
  %61 = vdwg.mxu0
  %vm62 = vcmp.gt.f32.partialorder %v57, 0.0
  %vm63 = vcmp.gt.f32.partialorder %v60, 0.0
  %v64 = vmul.f32 %v57, 0.2
  %v65 = vmul.f32 %v60, 0.2
  %v66 = vsel %vm62, %v57, %v64
  %v67 = vsel %vm63, %v60, %v65
  %v68 = vld [vmem:[%s3] sm:$0x1]
  %v70 = vperm.slane %v68, 0
  %v72 = vmul.f32 %v66, %v70
  %v73 = vmul.f32 %v67, %v70
  %vm74 = vcmask 162816
  %v75 = vsel %vm74, %v72, 0.0
  %76 = vadd.xlane.f32.xlu0 %v75
  %v77 = vpop.xlane.xlu0 %76
  %v78 = vsel %vm74, %v73, 0.0
  %79 = vadd.xlane.f32.xlu0 %v78
  %v80 = vpop.xlane.xlu0 %79
  %v81 = vld [vmem:[#allocation2] sm:$0x1]
  %v83 = vperm.slane %v81, 0
  %v85 = vadd.f32 %v77, %v83
  %v86 = vadd.f32 %v80, %v83
  %v87 = vxor.u32 %v85, 2147483648
  %v88 = vxor.u32 %v86, 2147483648
  %v89 = vmul.f32 %v87, 1.442695
  %v90 = vpow.pop %v89
  %v91 = vmul.f32 %v88, 1.442695
  %v92 = vpow.pop %v91
  %v93 = vadd.f32 %v90, 1.0
  %v94 = vadd.f32 %v92, 1.0
  %v95 = vrcp.pop %v93
  %v96 = vmul.f32 %v93, %v95
  %v97 = vsub.f32 1.0, %v96
  %v98 = vmul.f32 %v95, %v97
  %v99 = vadd.f32 %v95, %v98
  %vm100 = vweird.f32 %v93
  %vm101 = vweird.f32 %v95
  %vm102 = vmor %vm100, %vm101
  %v103 = vsel %vm102, %v95, %v99
  %v104 = vand.u32 2147483647, %v93
  %vm105 = vcmp.eq.f32.partialorder %v104, 8.507059e+37
  %v106 = vand.u32 %v93, 2147483648
  %v107 = vor.u32 1.1754944e-38, %v106
  %v108 = vsel %vm105, %v107, %v103
  %v109 = vmul.f32 1.0, %v108
  %v110 = vrcp.pop %v94
  %v111 = vmul.f32 %v94, %v110
  %v112 = vsub.f32 1.0, %v111
  %v113 = vmul.f32 %v110, %v112
  %v114 = vadd.f32 %v110, %v113
  %vm115 = vweird.f32 %v94
  %vm116 = vweird.f32 %v110
  %vm117 = vmor %vm115, %vm116
  %v118 = vsel %vm117, %v110, %v114
  %v119 = vand.u32 2147483647, %v94
  %vm120 = vcmp.eq.f32.partialorder %v119, 8.507059e+37
  %v121 = vand.u32 %v94, 2147483648
  %v122 = vor.u32 1.1754944e-38, %v121
  %v123 = vsel %vm120, %v122, %v118
  %v124 = vmul.f32 1.0, %v123
  %vm125 = vcmask 7168
  %126 = vst.msk [vmem:[%s5] sm:$0xff] %vm125, %v109
  %127 = vst.msk [vmem:[%s5 + $0x8] sm:$0xff] %vm125, %v124
  // Predicated region
  $region22: #{tpu_custom_call.1} parent=0 // pred_check
    _
  $region23: #{tpu_custom_call.1} parent=0 // pred_check_branch
    %129 = sbr.rel (0) target = $region25
  $region24: #{tpu_custom_call.1} parent=0 // pred_region
    _
  $region25: #{tpu_custom_call.1} parent=0 // pred_fallthru
    _
  // Predicated region
  $region26: #{tpu_custom_call.1} parent=0 // pred_check
    _
  $region27: #{tpu_custom_call.1} parent=0 // pred_check_branch
    %131 = sbr.rel (0) target = $region29
  $region28: #{tpu_custom_call.1} parent=0 // pred_region
    _
  $region29: #{tpu_custom_call.1} parent=0 // pred_fallthru
    _

</llo_original>
